<compile_context>
chip_gen: v7x
topology: tpu7x:2x2x1
jax: 0.10.0
libtpu: 0.0.40
codegen_flags: <defaults>
</compile_context>

<pallas_src>
import numpy as np
import jax
import jax.numpy as jnp
from jax.experimental import pallas as pl
from jax.experimental.pallas import tpu as pltpu


# ----------------------------- config (small, consistent with SFFN) -----------
NUM_HEADS = 2        # kwargs['num_heads']
LATENT = 32          # latent_dim (per-head dim; D = NUM_HEADS * LATENT)
FFN = 64             # ffn_dim
EMB = 32             # time_embed_dim
B, T = 2, 8
D = NUM_HEADS * LATENT
HID = NUM_HEADS * FFN          # fused block-diagonal hidden width (= 128, lane-dense)
LN_EPS = 1e-5                  # nn.LayerNorm default
_INV_SQRT2 = float(1.0 / np.sqrt(2.0))


def _silu(x):
    return x * jax.nn.sigmoid(x)


def _gelu_exact(x):
    # nn.GELU() default = exact (erf) variant
    return 0.5 * x * (1.0 + jax.lax.erf(x * _INV_SQRT2))


# ----------------------------- Pallas kernel ----------------------------------
def decoder_layer_kernel(x_ref, emb_ref,
                         w1_ref, b1_ref, w2_ref, b2_ref,
                         ws_ref, bs_ref, wt_ref, bt_ref,
                         g_ref, beta_ref, wout_ref, bout_ref,
                         o_ref):
    rows, d = x_ref.shape            # (B*T, D)
    bb = emb_ref.shape[0]            # batch size
    t = rows // bb

    x = x_ref[...]                                   # f32, kept for the residual

    # ---- SFFN heads fused as block-diagonal matmuls (dropout = identity) ----
    hid = jnp.dot(x, w1_ref[...], preferred_element_type=jnp.float32) + b1_ref[...]
    hid = _gelu_exact(hid)                           # (rows, HID) lane-dense
    y = jnp.dot(hid, w2_ref[...],
                preferred_element_type=jnp.float32) + b2_ref[...]   # (rows, D)

    # ---- StylizationBlock (proj_out) ----
    e = _silu(emb_ref[...])                          # (bb, EMB), f32
    scale = jnp.dot(e, ws_ref[...], preferred_element_type=jnp.float32) + bs_ref[...]  # (bb, D)
    shift = jnp.dot(e, wt_ref[...], preferred_element_type=jnp.float32) + bt_ref[...]  # (bb, D)

    mean = jnp.mean(y, axis=-1, keepdims=True)       # LayerNorm stats in f32
    var = jnp.mean(jnp.square(y - mean), axis=-1, keepdims=True)
    yn = (y - mean) * jax.lax.rsqrt(var + LN_EPS)
    yn = yn * g_ref[...] + beta_ref[...]

    if bb == 1:
        h = yn * (1.0 + scale) + shift
    else:
        # leading-dim reshape only (last dim unchanged -> tile-aligned, cheap)
        h = yn.reshape(bb, t, d) * (1.0 + scale[:, None, :]) + shift[:, None, :]
        h = h.reshape(rows, d)

    h = _silu(h)                                     # out_layers: SiLU, Dropout(id), Linear
    h = jnp.dot(h, wout_ref[...],
                preferred_element_type=jnp.float32) + bout_ref[...]

    o_ref[...] = (x + h).astype(o_ref.dtype)         # residual


# ----------------------------- one-time weight preprocessing -------------------
def prepare_params(params):
    """Fuse per-head weights once, OUTSIDE the per-call path (review item 2)."""
    (w1, b1, w2, b2, wemb, bemb, g, beta, wout, bout) = params
    H, L, F = w1.shape
    Dx = H * L

    # block-diagonal fused head weights: (D, H*F) and (H*F, D)
    w1_bd = jnp.zeros((Dx, H * F), jnp.float32)
    w2_bd = jnp.zeros((H * F, Dx), jnp.float32)
    for h in range(H):
        w1_bd = w1_bd.at[h * L:(h + 1) * L, h * F:(h + 1) * F].set(w1[h])
        w2_bd = w2_bd.at[h * F:(h + 1) * F, h * L:(h + 1) * L].set(w2[h])
    b1_cat = b1.reshape(1, H * F)
    b2_cat = b2.reshape(1, H * L)

    # emb projection split into lane-aligned scale / shift halves
    ws, wt = wemb[:, :Dx], wemb[:, Dx:]
    bs, bt = bemb[:, :Dx], bemb[:, Dx:]

    fused = (w1_bd, b1_cat, w2_bd, b2_cat, ws, bs, wt, bt, g, beta, wout, bout)
    return jax.tree_util.tree_map(jnp.asarray, fused)


# ----------------------------- wrapper ------------------------------------------
def _full_spec(arr):
    n = arr.ndim
    return pl.BlockSpec(arr.shape, lambda i, _n=n: (0,) * _n)


def decoder_layer(x, emb, fused):
    (w1_bd, b1_cat, w2_bd, b2_cat, ws, bs, wt, bt, g, beta, wout, bout) = fused
    Bx, Tx, Dx = x.shape
    E = emb.shape[1]

    x2 = x.reshape(Bx * Tx, Dx)      # metadata-only reshape; (B*T, D) slab

    out2 = pl.pallas_call(
        decoder_layer_kernel,
        out_shape=jax.ShapeDtypeStruct((Bx * Tx, Dx), jnp.float32),
        grid_spec=pltpu.PrefetchScalarGridSpec(
            num_scalar_prefetch=0,
            grid=(1,),                                   # single program: no per-step overhead,
            in_specs=[                                   # no duplicated weight DMA across cores
                pl.BlockSpec((Bx * Tx, Dx), lambda i: (0, 0)),   # all x rows
                pl.BlockSpec((Bx, E), lambda i: (0, 0)),         # emb
                _full_spec(w1_bd), _full_spec(b1_cat),
                _full_spec(w2_bd), _full_spec(b2_cat),
                _full_spec(ws), _full_spec(bs),
                _full_spec(wt), _full_spec(bt),
                _full_spec(g), _full_spec(beta),
                _full_spec(wout), _full_spec(bout),
            ],
            out_specs=pl.BlockSpec((Bx * Tx, Dx), lambda i: (0, 0)),
        ),
        compiler_params=pltpu.CompilerParams(
            dimension_semantics=("arbitrary",)),
    )(x2, emb, w1_bd, b1_cat, w2_bd, b2_cat,
      ws, bs, wt, bt, g, beta, wout, bout)
    return out2.reshape(Bx, Tx, Dx)


# ----------------------------- pure-JAX reference ------------------------------
def decoder_layer_ref(x, emb, params):
    (w1, b1, w2, b2, wemb, bemb, g, beta, wout, bout) = params
    xh = x.reshape(B, T, NUM_HEADS, LATENT)
    outs = []
    for h in range(NUM_HEADS):
        f = xh[:, :, h]
        f = jax.nn.gelu(f @ w1[h] + b1[h, 0], approximate=False)
        f = f @ w2[h] + b2[h, 0]
        outs.append(f)
    y = jnp.concatenate(outs, axis=-1)
    emb_out = jax.nn.silu(emb) @ wemb + bemb[0]                  # (B, 2D)
    scale, shift = emb_out[:, :D], emb_out[:, D:]
    mean = y.mean(-1, keepdims=True)
    var = ((y - mean) ** 2).mean(-1, keepdims=True)
    yn = (y - mean) / jnp.sqrt(var + LN_EPS) * g[0] + beta[0]
    hs = yn * (1.0 + scale[:, None, :]) + shift[:, None, :]
    hs = jax.nn.silu(hs)
    hs = hs @ wout + bout[0]
    return x + hs


# ----------------------------- params & driver ---------------------------------
def init_params(key):
    # Note: the original StylizationBlock zero-inits its output Linear; here all
    # parameters are small deterministic randoms so the kernel path is exercised.
    ks = jax.random.split(key, 12)
    s = 0.05
    w1 = s * jax.random.normal(ks[0], (NUM_HEADS, LATENT, FFN), jnp.float32)
    b1 = s * jax.random.normal(ks[1], (NUM_HEADS, 1, FFN), jnp.float32)
    w2 = s * jax.random.normal(ks[2], (NUM_HEADS, FFN, LATENT), jnp.float32)
    b2 = s * jax.random.normal(ks[3], (NUM_HEADS, 1, LATENT), jnp.float32)
    wemb = s * jax.random.normal(ks[4], (EMB, 2 * D), jnp.float32)
    bemb = s * jax.random.normal(ks[5], (1, 2 * D), jnp.float32)
    g = 1.0 + s * jax.random.normal(ks[6], (1, D), jnp.float32)
    beta = s * jax.random.normal(ks[7], (1, D), jnp.float32)
    wout = s * jax.random.normal(ks[8], (D, D), jnp.float32)
    bout = s * jax.random.normal(ks[9], (1, D), jnp.float32)
    return (w1, b1, w2, b2, wemb, bemb, g, beta, wout, bout)


if __name__ == "__main__":
    key = jax.random.PRNGKey(0)
    kx, ke, kp = jax.random.split(key, 3)
    x = jax.random.normal(kx, (B, T, D), jnp.float32)
    emb = jax.random.normal(ke, (B, EMB), jnp.float32)
    params = init_params(kp)

    # One-time weight fusion, hoisted out of the per-call path.
    fused = jax.tree_util.tree_map(jax.block_until_ready, prepare_params(params))

    fwd = jax.jit(decoder_layer)
    out = fwd(x, emb, fused)
    out = jax.block_until_ready(out)

    ref = decoder_layer_ref(x, emb, params)
    np.testing.assert_allclose(np.asarray(out), np.asarray(ref), rtol=5e-3, atol=5e-3)

    print("KERNEL_OK")
</pallas_src>

<mosaic_0001>
module attributes {stable_mosaic.version = 11 : i64} {
  func.func @decoder_layer_kernel(%arg0: i32, %arg1: memref<16x64xf32, #tpu.memory_space<vmem>>, %arg2: memref<2x32xf32, #tpu.memory_space<vmem>>, %arg3: memref<64x128xf32, #tpu.memory_space<vmem>>, %arg4: memref<1x128xf32, #tpu.memory_space<vmem>>, %arg5: memref<128x64xf32, #tpu.memory_space<vmem>>, %arg6: memref<1x64xf32, #tpu.memory_space<vmem>>, %arg7: memref<32x64xf32, #tpu.memory_space<vmem>>, %arg8: memref<1x64xf32, #tpu.memory_space<vmem>>, %arg9: memref<32x64xf32, #tpu.memory_space<vmem>>, %arg10: memref<1x64xf32, #tpu.memory_space<vmem>>, %arg11: memref<1x64xf32, #tpu.memory_space<vmem>>, %arg12: memref<1x64xf32, #tpu.memory_space<vmem>>, %arg13: memref<64x64xf32, #tpu.memory_space<vmem>>, %arg14: memref<1x64xf32, #tpu.memory_space<vmem>>, %arg15: memref<16x64xf32, #tpu.memory_space<vmem>>) attributes {dimension_semantics = [#tpu.dimension_semantics<arbitrary>], iteration_bounds = array<i64: 1>, scalar_prefetch = 0 : i64, scratch_operands = 0 : i64, tpu.core_type = #tpu.core_type<tc>, window_params = [{pipeline_mode = #tpu.pipeline_mode<synchronous>, transform_indices = @transform_0, window_bounds = array<i64: 16, 64>}, {pipeline_mode = #tpu.pipeline_mode<synchronous>, transform_indices = @transform_1, window_bounds = array<i64: 2, 32>}, {pipeline_mode = #tpu.pipeline_mode<synchronous>, transform_indices = @transform_2, window_bounds = array<i64: 64, 128>}, {pipeline_mode = #tpu.pipeline_mode<synchronous>, transform_indices = @transform_3, window_bounds = array<i64: 1, 128>}, {pipeline_mode = #tpu.pipeline_mode<synchronous>, transform_indices = @transform_4, window_bounds = array<i64: 128, 64>}, {pipeline_mode = #tpu.pipeline_mode<synchronous>, transform_indices = @transform_5, window_bounds = array<i64: 1, 64>}, {pipeline_mode = #tpu.pipeline_mode<synchronous>, transform_indices = @transform_6, window_bounds = array<i64: 32, 64>}, {pipeline_mode = #tpu.pipeline_mode<synchronous>, transform_indices = @transform_7, window_bounds = array<i64: 1, 64>}, {pipeline_mode = #tpu.pipeline_mode<synchronous>, transform_indices = @transform_8, window_bounds = array<i64: 32, 64>}, {pipeline_mode = #tpu.pipeline_mode<synchronous>, transform_indices = @transform_9, window_bounds = array<i64: 1, 64>}, {pipeline_mode = #tpu.pipeline_mode<synchronous>, transform_indices = @transform_10, window_bounds = array<i64: 1, 64>}, {pipeline_mode = #tpu.pipeline_mode<synchronous>, transform_indices = @transform_11, window_bounds = array<i64: 1, 64>}, {pipeline_mode = #tpu.pipeline_mode<synchronous>, transform_indices = @transform_12, window_bounds = array<i64: 64, 64>}, {pipeline_mode = #tpu.pipeline_mode<synchronous>, transform_indices = @transform_13, window_bounds = array<i64: 1, 64>}, {pipeline_mode = #tpu.pipeline_mode<synchronous>, transform_indices = @transform_14, window_bounds = array<i64: 16, 64>}]} {
    %c0 = arith.constant 0 : index
    %c0_0 = arith.constant 0 : index
    %0 = vector.load %arg1[%c0, %c0_0] : memref<16x64xf32, #tpu.memory_space<vmem>>, vector<16x64xf32>
    %c0_1 = arith.constant 0 : index
    %c0_2 = arith.constant 0 : index
    %1 = vector.load %arg3[%c0_1, %c0_2] : memref<64x128xf32, #tpu.memory_space<vmem>>, vector<64x128xf32>
    %cst = arith.constant dense<0.000000e+00> : vector<16x128xf32>
    %2 = tpu.matmul %0, %1, %cst {dimension_numbers = #tpu.dot_dimension_numbers<[1], [0], [0], [1], [0, 0, 1, 1], [], []>} : vector<16x64xf32>, vector<64x128xf32>, vector<16x128xf32> -> vector<16x128xf32>
    %c0_3 = arith.constant 0 : index
    %c0_4 = arith.constant 0 : index
    %3 = vector.load %arg4[%c0_3, %c0_4] : memref<1x128xf32, #tpu.memory_space<vmem>>, vector<1x128xf32>
    %4 = vector.broadcast %3 : vector<1x128xf32> to vector<16x128xf32>
    %5 = arith.addf %2, %4 : vector<16x128xf32>
    %cst_5 = arith.constant 5.000000e-01 : f32
    %6 = vector.broadcast %cst_5 : f32 to vector<16x128xf32>
    %7 = arith.mulf %6, %5 : vector<16x128xf32>
    %cst_6 = arith.constant 0.707106769 : f32
    %8 = vector.broadcast %cst_6 : f32 to vector<16x128xf32>
    %9 = arith.mulf %5, %8 : vector<16x128xf32>
    %10 = math.erf %9 : vector<16x128xf32>
    %cst_7 = arith.constant 1.000000e+00 : f32
    %11 = vector.broadcast %cst_7 : f32 to vector<16x128xf32>
    %12 = arith.addf %11, %10 : vector<16x128xf32>
    %13 = arith.mulf %7, %12 : vector<16x128xf32>
    %c0_8 = arith.constant 0 : index
    %c0_9 = arith.constant 0 : index
    %14 = vector.load %arg5[%c0_8, %c0_9] : memref<128x64xf32, #tpu.memory_space<vmem>>, vector<128x64xf32>
    %cst_10 = arith.constant dense<0.000000e+00> : vector<16x64xf32>
    %15 = tpu.matmul %13, %14, %cst_10 {dimension_numbers = #tpu.dot_dimension_numbers<[1], [0], [0], [1], [0, 0, 1, 1], [], []>} : vector<16x128xf32>, vector<128x64xf32>, vector<16x64xf32> -> vector<16x64xf32>
    %c0_11 = arith.constant 0 : index
    %c0_12 = arith.constant 0 : index
    %16 = vector.load %arg6[%c0_11, %c0_12] : memref<1x64xf32, #tpu.memory_space<vmem>>, vector<1x64xf32>
    %17 = vector.broadcast %16 : vector<1x64xf32> to vector<16x64xf32>
    %18 = arith.addf %15, %17 : vector<16x64xf32>
    %c0_13 = arith.constant 0 : index
    %c0_14 = arith.constant 0 : index
    %19 = vector.load %arg2[%c0_13, %c0_14] : memref<2x32xf32, #tpu.memory_space<vmem>>, vector<2x32xf32>
    %20 = arith.negf %19 : vector<2x32xf32>
    %21 = math.exp %20 : vector<2x32xf32>
    %cst_15 = arith.constant 1.000000e+00 : f32
    %22 = vector.broadcast %cst_15 : f32 to vector<2x32xf32>
    %23 = arith.addf %22, %21 : vector<2x32xf32>
    %24 = arith.divf %22, %23 : vector<2x32xf32>
    %25 = arith.mulf %19, %24 : vector<2x32xf32>
    %c0_16 = arith.constant 0 : index
    %c0_17 = arith.constant 0 : index
    %26 = vector.load %arg7[%c0_16, %c0_17] : memref<32x64xf32, #tpu.memory_space<vmem>>, vector<32x64xf32>
    %cst_18 = arith.constant dense<0.000000e+00> : vector<2x64xf32>
    %27 = tpu.matmul %25, %26, %cst_18 {dimension_numbers = #tpu.dot_dimension_numbers<[1], [0], [0], [1], [0, 0, 1, 1], [], []>} : vector<2x32xf32>, vector<32x64xf32>, vector<2x64xf32> -> vector<2x64xf32>
    %c0_19 = arith.constant 0 : index
    %c0_20 = arith.constant 0 : index
    %28 = vector.load %arg8[%c0_19, %c0_20] : memref<1x64xf32, #tpu.memory_space<vmem>>, vector<1x64xf32>
    %29 = vector.broadcast %28 : vector<1x64xf32> to vector<2x64xf32>
    %30 = arith.addf %27, %29 : vector<2x64xf32>
    %c0_21 = arith.constant 0 : index
    %c0_22 = arith.constant 0 : index
    %31 = vector.load %arg9[%c0_21, %c0_22] : memref<32x64xf32, #tpu.memory_space<vmem>>, vector<32x64xf32>
    %cst_23 = arith.constant dense<0.000000e+00> : vector<2x64xf32>
    %32 = tpu.matmul %25, %31, %cst_23 {dimension_numbers = #tpu.dot_dimension_numbers<[1], [0], [0], [1], [0, 0, 1, 1], [], []>} : vector<2x32xf32>, vector<32x64xf32>, vector<2x64xf32> -> vector<2x64xf32>
    %c0_24 = arith.constant 0 : index
    %c0_25 = arith.constant 0 : index
    %33 = vector.load %arg10[%c0_24, %c0_25] : memref<1x64xf32, #tpu.memory_space<vmem>>, vector<1x64xf32>
    %34 = vector.broadcast %33 : vector<1x64xf32> to vector<2x64xf32>
    %35 = arith.addf %32, %34 : vector<2x64xf32>
    %cst_26 = arith.constant dense<0.000000e+00> : vector<16xf32>
    %36 = vector.multi_reduction <add>, %18, %cst_26 [1] : vector<16x64xf32> to vector<16xf32>
    %37 = vector.shape_cast %36 : vector<16xf32> to vector<16x1xf32>
    %cst_27 = arith.constant 6.400000e+01 : f32
    %38 = vector.broadcast %cst_27 : f32 to vector<16x1xf32>
    %39 = arith.divf %37, %38 : vector<16x1xf32>
    %40 = vector.broadcast %39 : vector<16x1xf32> to vector<16x64xf32>
    %41 = arith.subf %18, %40 : vector<16x64xf32>
    %42 = arith.mulf %41, %41 : vector<16x64xf32>
    %cst_28 = arith.constant dense<0.000000e+00> : vector<16xf32>
    %43 = vector.multi_reduction <add>, %42, %cst_28 [1] : vector<16x64xf32> to vector<16xf32>
    %44 = vector.shape_cast %43 : vector<16xf32> to vector<16x1xf32>
    %cst_29 = arith.constant 6.400000e+01 : f32
    %45 = vector.broadcast %cst_29 : f32 to vector<16x1xf32>
    %46 = arith.divf %44, %45 : vector<16x1xf32>
    %47 = vector.broadcast %39 : vector<16x1xf32> to vector<16x64xf32>
    %48 = arith.subf %18, %47 : vector<16x64xf32>
    %cst_30 = arith.constant 9.99999974E-6 : f32
    %49 = vector.broadcast %cst_30 : f32 to vector<16x1xf32>
    %50 = arith.addf %46, %49 : vector<16x1xf32>
    %51 = math.rsqrt %50 : vector<16x1xf32>
    %52 = vector.broadcast %51 : vector<16x1xf32> to vector<16x64xf32>
    %53 = arith.mulf %48, %52 : vector<16x64xf32>
    %c0_31 = arith.constant 0 : index
    %c0_32 = arith.constant 0 : index
    %54 = vector.load %arg11[%c0_31, %c0_32] : memref<1x64xf32, #tpu.memory_space<vmem>>, vector<1x64xf32>
    %55 = vector.broadcast %54 : vector<1x64xf32> to vector<16x64xf32>
    %56 = arith.mulf %53, %55 : vector<16x64xf32>
    %c0_33 = arith.constant 0 : index
    %c0_34 = arith.constant 0 : index
    %57 = vector.load %arg12[%c0_33, %c0_34] : memref<1x64xf32, #tpu.memory_space<vmem>>, vector<1x64xf32>
    %58 = vector.broadcast %57 : vector<1x64xf32> to vector<16x64xf32>
    %59 = arith.addf %56, %58 : vector<16x64xf32>
    %60 = vector.shape_cast %59 : vector<16x64xf32> to vector<2x8x64xf32>
    %61 = vector.shape_cast %30 : vector<2x64xf32> to vector<2x1x64xf32>
    %cst_35 = arith.constant 1.000000e+00 : f32
    %62 = vector.broadcast %cst_35 : f32 to vector<2x1x64xf32>
    %63 = arith.addf %62, %61 : vector<2x1x64xf32>
    %64 = vector.broadcast %63 : vector<2x1x64xf32> to vector<2x8x64xf32>
    %65 = arith.mulf %60, %64 : vector<2x8x64xf32>
    %66 = vector.shape_cast %35 : vector<2x64xf32> to vector<2x1x64xf32>
    %67 = vector.broadcast %66 : vector<2x1x64xf32> to vector<2x8x64xf32>
    %68 = arith.addf %65, %67 : vector<2x8x64xf32>
    %69 = vector.shape_cast %68 : vector<2x8x64xf32> to vector<16x64xf32>
    %70 = arith.negf %69 : vector<16x64xf32>
    %71 = math.exp %70 : vector<16x64xf32>
    %cst_36 = arith.constant 1.000000e+00 : f32
    %72 = vector.broadcast %cst_36 : f32 to vector<16x64xf32>
    %73 = arith.addf %72, %71 : vector<16x64xf32>
    %74 = arith.divf %72, %73 : vector<16x64xf32>
    %75 = arith.mulf %69, %74 : vector<16x64xf32>
    %c0_37 = arith.constant 0 : index
    %c0_38 = arith.constant 0 : index
    %76 = vector.load %arg13[%c0_37, %c0_38] : memref<64x64xf32, #tpu.memory_space<vmem>>, vector<64x64xf32>
    %cst_39 = arith.constant dense<0.000000e+00> : vector<16x64xf32>
    %77 = tpu.matmul %75, %76, %cst_39 {dimension_numbers = #tpu.dot_dimension_numbers<[1], [0], [0], [1], [0, 0, 1, 1], [], []>} : vector<16x64xf32>, vector<64x64xf32>, vector<16x64xf32> -> vector<16x64xf32>
    %c0_40 = arith.constant 0 : index
    %c0_41 = arith.constant 0 : index
    %78 = vector.load %arg14[%c0_40, %c0_41] : memref<1x64xf32, #tpu.memory_space<vmem>>, vector<1x64xf32>
    %79 = vector.broadcast %78 : vector<1x64xf32> to vector<16x64xf32>
    %80 = arith.addf %77, %79 : vector<16x64xf32>
    %81 = arith.addf %0, %80 : vector<16x64xf32>
    %c0_42 = arith.constant 0 : index
    %c0_43 = arith.constant 0 : index
    %82 = vector.load %arg15[%c0_42, %c0_43] : memref<16x64xf32, #tpu.memory_space<vmem>>, vector<16x64xf32>
    tpu.vector_store %arg15[%c0_42, %c0_43], %81 {strides = array<i32>} : memref<16x64xf32, #tpu.memory_space<vmem>>, vector<16x64xf32>,
    return
  }
  func.func @transform_0(%arg0: i32) -> (i32, i32) {
    %c0_i32 = arith.constant 0 : i32
    %c0_i32_0 = arith.constant 0 : i32
    %c0_i32_1 = arith.constant 0 : i32
    return %c0_i32, %c0_i32_0 : i32, i32
  }
  func.func @transform_1(%arg0: i32) -> (i32, i32) {
    %c0_i32 = arith.constant 0 : i32
    %c0_i32_0 = arith.constant 0 : i32
    %c0_i32_1 = arith.constant 0 : i32
    return %c0_i32, %c0_i32_0 : i32, i32
  }
  func.func @transform_2(%arg0: i32) -> (i32, i32) {
    %c0_i32 = arith.constant 0 : i32
    %c0_i32_0 = arith.constant 0 : i32
    %c0_i32_1 = arith.constant 0 : i32
    return %c0_i32, %c0_i32_0 : i32, i32
  }
  func.func @transform_3(%arg0: i32) -> (i32, i32) {
    %c0_i32 = arith.constant 0 : i32
    %c0_i32_0 = arith.constant 0 : i32
    %c0_i32_1 = arith.constant 0 : i32
    return %c0_i32, %c0_i32_0 : i32, i32
  }
  func.func @transform_4(%arg0: i32) -> (i32, i32) {
    %c0_i32 = arith.constant 0 : i32
    %c0_i32_0 = arith.constant 0 : i32
    %c0_i32_1 = arith.constant 0 : i32
    return %c0_i32, %c0_i32_0 : i32, i32
  }
  func.func @transform_5(%arg0: i32) -> (i32, i32) {
    %c0_i32 = arith.constant 0 : i32
    %c0_i32_0 = arith.constant 0 : i32
    %c0_i32_1 = arith.constant 0 : i32
    return %c0_i32, %c0_i32_0 : i32, i32
  }
  func.func @transform_6(%arg0: i32) -> (i32, i32) {
    %c0_i32 = arith.constant 0 : i32
    %c0_i32_0 = arith.constant 0 : i32
    %c0_i32_1 = arith.constant 0 : i32
    return %c0_i32, %c0_i32_0 : i32, i32
  }
  func.func @transform_7(%arg0: i32) -> (i32, i32) {
    %c0_i32 = arith.constant 0 : i32
    %c0_i32_0 = arith.constant 0 : i32
    %c0_i32_1 = arith.constant 0 : i32
    return %c0_i32, %c0_i32_0 : i32, i32
  }
  func.func @transform_8(%arg0: i32) -> (i32, i32) {
    %c0_i32 = arith.constant 0 : i32
    %c0_i32_0 = arith.constant 0 : i32
    %c0_i32_1 = arith.constant 0 : i32
    return %c0_i32, %c0_i32_0 : i32, i32
  }
  func.func @transform_9(%arg0: i32) -> (i32, i32) {
    %c0_i32 = arith.constant 0 : i32
    %c0_i32_0 = arith.constant 0 : i32
    %c0_i32_1 = arith.constant 0 : i32
    return %c0_i32, %c0_i32_0 : i32, i32
  }
  func.func @transform_10(%arg0: i32) -> (i32, i32) {
    %c0_i32 = arith.constant 0 : i32
    %c0_i32_0 = arith.constant 0 : i32
    %c0_i32_1 = arith.constant 0 : i32
    return %c0_i32, %c0_i32_0 : i32, i32
  }
  func.func @transform_11(%arg0: i32) -> (i32, i32) {
    %c0_i32 = arith.constant 0 : i32
    %c0_i32_0 = arith.constant 0 : i32
    %c0_i32_1 = arith.constant 0 : i32
    return %c0_i32, %c0_i32_0 : i32, i32
  }
  func.func @transform_12(%arg0: i32) -> (i32, i32) {
    %c0_i32 = arith.constant 0 : i32
    %c0_i32_0 = arith.constant 0 : i32
    %c0_i32_1 = arith.constant 0 : i32
    return %c0_i32, %c0_i32_0 : i32, i32
  }
  func.func @transform_13(%arg0: i32) -> (i32, i32) {
    %c0_i32 = arith.constant 0 : i32
    %c0_i32_0 = arith.constant 0 : i32
    %c0_i32_1 = arith.constant 0 : i32
    return %c0_i32, %c0_i32_0 : i32, i32
  }
  func.func @transform_14(%arg0: i32) -> (i32, i32) {
    %c0_i32 = arith.constant 0 : i32
    %c0_i32_0 = arith.constant 0 : i32
    %c0_i32_1 = arith.constant 0 : i32
    return %c0_i32, %c0_i32_0 : i32, i32
  }
}

</mosaic_0001>

<llo_original>
// kernel: decoder_layer.1
$region0: #{decoder_layer.1}
  #allocation0 [shape = 'u32[]', space=smem, size = 0x4, offset = 0x4, fixed_abs, tag = 'smem constant byte address 0x4 - core index']
  #allocation1 [shape = 'u32[144,128]{1,0:T(1,128)}', space=vmem, size = 0x12000, scoped, tag = 'internal scratch']
  %s0 = inlined_call_operand.hbm [shape: f32[16,64], index: 0, kind: input, shape index: {}]
  %s1 = inlined_call_operand.vmem [shape: f32[2,32], index: 1, kind: input, shape index: {}]
  %s2 = inlined_call_operand.vmem [shape: f32[64,128], index: 2, kind: input, shape index: {}]
  %s3 = inlined_call_operand.vmem [shape: f32[1,128], index: 3, kind: input, shape index: {}]
  %s4 = inlined_call_operand.vmem [shape: f32[128,64], index: 4, kind: input, shape index: {}]
  %s5 = inlined_call_operand.vmem [shape: f32[1,64], index: 5, kind: input, shape index: {}]
  %s6 = inlined_call_operand.vmem [shape: f32[32,64], index: 6, kind: input, shape index: {}]
  %s7 = inlined_call_operand.vmem [shape: f32[1,64], index: 7, kind: input, shape index: {}]
  %s8 = inlined_call_operand.vmem [shape: f32[32,64], index: 8, kind: input, shape index: {}]
  %s9 = inlined_call_operand.vmem [shape: f32[1,64], index: 9, kind: input, shape index: {}]
  %s10 = inlined_call_operand.vmem [shape: f32[1,64], index: 10, kind: input, shape index: {}]
  %s11 = inlined_call_operand.vmem [shape: f32[1,64], index: 11, kind: input, shape index: {}]
  %s12 = inlined_call_operand.vmem [shape: f32[64,64], index: 12, kind: input, shape index: {}]
  %s13 = inlined_call_operand.vmem [shape: f32[1,64], index: 13, kind: input, shape index: {}]
  %s14 = inlined_call_operand.hbm [shape: f32[16,64], index: 14, kind: output, shape index: {}]
  %s15 = sld [smem:[#allocation0]]
  $region70: #{decoder_layer.1} parent=0
    _
  %s17 = ssub.s32 1, %s15
  %s18 = scalar_select 0, %s17, %s15
  $region1: #{decoder_layer.1} parent=0
    #allocation2 [shape = 'u8[8192]{0}', space=vmem, size = 0x2000, scoped, tag = 'input window, operand 0, single buffered']
    #allocation3 [shape = 's32[1]{0}', space=sflag, size = 0x4, scoped, tag = 'scoped memory for decoder_layer.1']
    #allocation4 [shape = 's32[1]{0}', space=sflag, size = 0x4, scoped, tag = 'scoped memory for decoder_layer.1']
    #allocation5 [shape = 'u8[8192]{0}', space=vmem, size = 0x2000, scoped, tag = 'output window, operand 0, single buffered']
    %19 = vsyncpa [#allocation3], 0
    %20 = vsyncpa [#allocation4], 0
    // Predicated region
    $region2: #{decoder_layer.1} parent=1 // pred_check
      _
    $region3: #{decoder_layer.1} parent=1 // pred_check_branch
      %22 = sbr.rel (0) target = $region5
    $region4: #{decoder_layer.1} parent=1 // pred_region
      %s24 = ssub.s32 256, 256
      %25 = vsyncadd [#allocation3], %s24
      %s26 = sshll.u32 [#allocation2], 4
      %s27 = int_to_ptr.vmem [resolvable:$true] %s26
      %32 = dma.hbm_to_vmem [thread:$0]  %s0, 256, %s27, [#allocation3], 128, 128, 8
    $region5: #{decoder_layer.1} parent=1 // pred_fallthru
      _
    // Predicated region
    $region6: #{decoder_layer.1} parent=1 // pred_check
      _
    $region7: #{decoder_layer.1} parent=1 // pred_check_branch
      %34 = sbr.rel (0) target = $region9
    $region8: #{decoder_layer.1} parent=1 // pred_region
      _
    $region9: #{decoder_layer.1} parent=1 // pred_fallthru
      _
    // Predicated region
    $region10: #{decoder_layer.1} parent=1 // pred_check
      _
    $region11: #{decoder_layer.1} parent=1 // pred_check_branch
      %36 = sbr.rel (0) target = $region13
    $region12: #{decoder_layer.1} parent=1 // pred_region
      _
    $region13: #{decoder_layer.1} parent=1 // pred_fallthru
      _
    // Predicated region
    $region14: #{decoder_layer.1} parent=1 // pred_check
      _
    $region15: #{decoder_layer.1} parent=1 // pred_check_branch
      %38 = sbr.rel (0) target = $region17
    $region16: #{decoder_layer.1} parent=1 // pred_region
      _
    $region17: #{decoder_layer.1} parent=1 // pred_fallthru
      _
    // Predicated region
    $region18: #{decoder_layer.1} parent=1 // pred_check
      _
    $region19: #{decoder_layer.1} parent=1 // pred_check_branch
      %40 = sbr.rel (0) target = $region21
    $region20: #{decoder_layer.1} parent=1 // pred_region
      _
    $region21: #{decoder_layer.1} parent=1 // pred_fallthru
      _
    // Predicated region
    $region22: #{decoder_layer.1} parent=1 // pred_check
      _
    $region23: #{decoder_layer.1} parent=1 // pred_check_branch
      %42 = sbr.rel (0) target = $region25
    $region24: #{decoder_layer.1} parent=1 // pred_region
      _
    $region25: #{decoder_layer.1} parent=1 // pred_fallthru
      _
    // Predicated region
    $region26: #{decoder_layer.1} parent=1 // pred_check
      _
    $region27: #{decoder_layer.1} parent=1 // pred_check_branch
      %44 = sbr.rel (0) target = $region29
    $region28: #{decoder_layer.1} parent=1 // pred_region
      _
    $region29: #{decoder_layer.1} parent=1 // pred_fallthru
      _
    // Predicated region
    $region30: #{decoder_layer.1} parent=1 // pred_check
      _
    $region31: #{decoder_layer.1} parent=1 // pred_check_branch
      %46 = sbr.rel (0) target = $region33
    $region32: #{decoder_layer.1} parent=1 // pred_region
      _
    $region33: #{decoder_layer.1} parent=1 // pred_fallthru
      _
    // Predicated region
    $region34: #{decoder_layer.1} parent=1 // pred_check
      _
    $region35: #{decoder_layer.1} parent=1 // pred_check_branch
      %48 = sbr.rel (0) target = $region37
    $region36: #{decoder_layer.1} parent=1 // pred_region
      _
    $region37: #{decoder_layer.1} parent=1 // pred_fallthru
      _
    // Predicated region
    $region38: #{decoder_layer.1} parent=1 // pred_check
      _
    $region39: #{decoder_layer.1} parent=1 // pred_check_branch
      %50 = sbr.rel (0) target = $region41
    $region40: #{decoder_layer.1} parent=1 // pred_region
      _
    $region41: #{decoder_layer.1} parent=1 // pred_fallthru
      _
    // Predicated region
    $region42: #{decoder_layer.1} parent=1 // pred_check
      _
    $region43: #{decoder_layer.1} parent=1 // pred_check_branch
      %52 = sbr.rel (0) target = $region45
    $region44: #{decoder_layer.1} parent=1 // pred_region
      _
    $region45: #{decoder_layer.1} parent=1 // pred_fallthru
      _
    // Predicated region
    $region46: #{decoder_layer.1} parent=1 // pred_check
      _
    $region47: #{decoder_layer.1} parent=1 // pred_check_branch
      %54 = sbr.rel (0) target = $region49
    $region48: #{decoder_layer.1} parent=1 // pred_region
      _
    $region49: #{decoder_layer.1} parent=1 // pred_fallthru
      _
    // Predicated region
    $region50: #{decoder_layer.1} parent=1 // pred_check
      _
    $region51: #{decoder_layer.1} parent=1 // pred_check_branch
      %56 = sbr.rel (0) target = $region53
    $region52: #{decoder_layer.1} parent=1 // pred_region
      _
    $region53: #{decoder_layer.1} parent=1 // pred_fallthru
      _
    // Predicated region
    $region54: #{decoder_layer.1} parent=1 // pred_check
      _
    $region55: #{decoder_layer.1} parent=1 // pred_check_branch
      %58 = sbr.rel (0) target = $region57
    $region56: #{decoder_layer.1} parent=1 // pred_region
      _
    $region57: #{decoder_layer.1} parent=1 // pred_fallthru
      _
    // Predicated region
    $region58: #{decoder_layer.1} parent=1 // pred_check
      _
    $region59: #{decoder_layer.1} parent=1 // pred_check_branch
      %60 = sbr.rel (0) target = $region61
    $region60: #{decoder_layer.1} parent=1 // pred_region
      %61 = dma.done [#allocation3], 256
    $region61: #{decoder_layer.1} parent=1 // pred_fallthru
      _
    %v62 = vld [vmem:[#allocation2] sm:$0xff]
    %v63 = vld [vmem:[#allocation2 + $0x8] sm:$0xff]
    %v64 = vld [vmem:[%s2] sm:$0xff]
    %v65 = vld [vmem:[%s2 + $0x8] sm:$0xff]
    %v66 = vld [vmem:[%s2 + $0x10] sm:$0xff]
    %v67 = vld [vmem:[%s2 + $0x18] sm:$0xff]
    %v68 = vld [vmem:[%s2 + $0x20] sm:$0xff]
    %v69 = vld [vmem:[%s2 + $0x28] sm:$0xff]
    %v70 = vld [vmem:[%s2 + $0x30] sm:$0xff]
    %v71 = vld [vmem:[%s2 + $0x38] sm:$0xff]
    %v72 = vld [vmem:[%s3] sm:$0x1]
    %v74 = vlaneseq
    %v75 = vshrl.u32 %v74, 7
    %v76 = vsub.s32 0, %v75
    %v77 = vrot.slane %v72, %v76
    %vm79 = vcmask 523264
    %v81 = vsel %vm79, %v62, 0
    %v84 = vsel %vm79, %v63, 0
    %86 = vmatprep.subr.mxu0 0.0
    %87 = vmatpush1.msra.mxu0 %v64
    %88 = vmatprep.subr.mxu0 0.0
    %89 = vmatpush1.msra.mxu0 %v65
    %90 = vmatprep.subr.mxu0 0.0
    %91 = vmatpush1.msra.mxu0 %v66
    %92 = vmatprep.subr.mxu0 0.0
    %93 = vmatpush1.msra.mxu0 %v67
    %94 = vmatprep.subr.mxu0 0.0
    %95 = vmatpush1.msra.mxu0 %v68
    %96 = vmatprep.subr.mxu0 0.0
    %97 = vmatpush1.msra.mxu0 %v69
    %98 = vmatprep.subr.mxu0 0.0
    %99 = vmatpush1.msra.mxu0 %v70
    %100 = vmatprep.subr.mxu0 0.0
    %101 = vmatpush1.msra.mxu0 %v71
    %102 = vmatprep.subr.mxu0 0.0
    %103 = vmatpush1.msra.mxu0 0.0
    %104 = vmatprep.subr.mxu0 0.0
    %105 = vmatpush1.msra.mxu0 0.0
    %106 = vmatprep.subr.mxu0 0.0
    %107 = vmatpush1.msra.mxu0 0.0
    %108 = vmatprep.subr.mxu0 0.0
    %109 = vmatpush1.msra.mxu0 0.0
    %110 = vmatprep.subr.mxu0 0.0
    %111 = vmatpush1.msra.mxu0 0.0
    %112 = vmatprep.subr.mxu0 0.0
    %113 = vmatpush1.msra.mxu0 0.0
    %114 = vmatprep.subr.mxu0 0.0
    %115 = vmatpush1.msra.mxu0 0.0
    %116 = vmatprep.subr.mxu0 0.0
    %117 = vmatpush1.msra.mxu0 0.0
    %118 = vmatprep.subr.mxu0 0.0
    %119 = vmatpush1.msra.mxu0 0.0
    %120 = vmatprep.subr.mxu0 0.0
    %121 = vmatpush1.msra.mxu0 0.0
    %122 = vmatprep.subr.mxu0 0.0
    %123 = vmatpush1.msra.mxu0 0.0
    %124 = vmatprep.subr.mxu0 0.0
    %125 = vmatpush1.msra.mxu0 0.0
    %126 = vmatprep.subr.mxu0 0.0
    %127 = vmatpush1.msra.mxu0 0.0
    %128 = vmatprep.subr.mxu0 0.0
    %129 = vmatpush1.msra.mxu0 0.0
    %130 = vmatprep.subr.mxu0 0.0
    %131 = vmatpush1.msra.mxu0 0.0
    %132 = vmatprep.subr.mxu0 0.0
    %133 = vmatpush1.msra.mxu0 0.0
    %134 = vmatprep.subr.mxu0 0.0
    %135 = vmatpush1.msra.mxu0 0.0
    %136 = vmatprep.subr.mxu0 0.0
    %137 = vmatpush1.msra.mxu0 0.0
    %138 = vmatprep.subr.mxu0 0.0
    %139 = vmatpush1.msra.mxu0 0.0
    %140 = vmatprep.subr.mxu0 0.0
    %141 = vmatpush1.msra.mxu0 0.0
    %142 = vmatprep.subr.mxu0 0.0
    %143 = vmatpush1.msra.mxu0 0.0
    %144 = vmatprep.subr.mxu0 0.0
    %145 = vmatpush1.msra.mxu0 0.0
    %146 = vmatprep.subr.mxu0 0.0
    %147 = vmatpush1.msra.mxu0 0.0
    %148 = vmatprep.subr.mxu0 0.0
    %149 = vmatpush1.msra.mxu0 0.0
    %150 = vmatprep.mubr.f32.mxu0 0.0
    %151 = vmatmul.mubr.f32.gmra.mrb[0].mxu0 %v81
    %v152 = vpop.f32.mrb[0].mxu0
    %v153 = vadd.f32 %v77, %v152
    %v154 = vpop.f32.mrb[0].mxu0
    %155 = vmatprep.mubr.f32.mxu0 0.0
    %156 = vmatmul.mubr.f32.gmra.mrb[0].mxu0 %v84
    %v157 = vpop.f32.mrb[0].mxu0
    %v158 = vadd.f32 %v77, %v157
    %v159 = vpop.f32.mrb[0].mxu0
    %160 = vdwg.mxu0
    %v161 = vmul.f32 %v153, 0.5
    %v162 = vmul.f32 %v158, 0.5
    %v163 = vmul.f32 %v153, 0.70710677
    %v164 = vmul.f32 %v158, 0.70710677
    %v165 = verf.f32.pop %v163
    %v166 = verf.f32.pop %v164
    %v167 = vadd.f32 %v165, 1.0
    %v168 = vadd.f32 %v166, 1.0
    %v169 = vmul.f32 %v161, %v167
    %v170 = vmul.f32 %v162, %v168
    %v171 = vld [vmem:[%s4] sm:$0xff]
    %v172 = vld [vmem:[%s4 + $0x8] sm:$0xff]
    %v173 = vld [vmem:[%s4 + $0x10] sm:$0xff]
    %v174 = vld [vmem:[%s4 + $0x18] sm:$0xff]
    %v175 = vld [vmem:[%s4 + $0x20] sm:$0xff]
    %v176 = vld [vmem:[%s4 + $0x28] sm:$0xff]
    %v177 = vld [vmem:[%s4 + $0x30] sm:$0xff]
    %v178 = vld [vmem:[%s4 + $0x38] sm:$0xff]
    %v179 = vld [vmem:[%s4 + $0x40] sm:$0xff]
    %v180 = vld [vmem:[%s4 + $0x48] sm:$0xff]
    %v181 = vld [vmem:[%s4 + $0x50] sm:$0xff]
    %v182 = vld [vmem:[%s4 + $0x58] sm:$0xff]
    %v183 = vld [vmem:[%s4 + $0x60] sm:$0xff]
    %v184 = vld [vmem:[%s4 + $0x68] sm:$0xff]
    %v185 = vld [vmem:[%s4 + $0x70] sm:$0xff]
    %v186 = vld [vmem:[%s4 + $0x78] sm:$0xff]
    %v187 = vld [vmem:[%s5] sm:$0x1]
    %v189 = vlaneseq
    %v190 = vshrl.u32 %v189, 7
    %v191 = vsub.s32 0, %v190
    %v192 = vrot.slane %v187, %v191
    %194 = vmatprep.subr.mxu0 0.0
    %195 = vmatpush1.msra.mxu0 %v171
    %196 = vmatprep.subr.mxu0 0.0
    %197 = vmatpush1.msra.mxu0 %v172
    %198 = vmatprep.subr.mxu0 0.0
    %199 = vmatpush1.msra.mxu0 %v173
    %200 = vmatprep.subr.mxu0 0.0
    %201 = vmatpush1.msra.mxu0 %v174
    %202 = vmatprep.subr.mxu0 0.0
    %203 = vmatpush1.msra.mxu0 %v175
    %204 = vmatprep.subr.mxu0 0.0
    %205 = vmatpush1.msra.mxu0 %v176
    %206 = vmatprep.subr.mxu0 0.0
    %207 = vmatpush1.msra.mxu0 %v177
    %208 = vmatprep.subr.mxu0 0.0
    %209 = vmatpush1.msra.mxu0 %v178
    %210 = vmatprep.subr.mxu0 0.0
    %211 = vmatpush1.msra.mxu0 %v179
    %212 = vmatprep.subr.mxu0 0.0
    %213 = vmatpush1.msra.mxu0 %v180
    %214 = vmatprep.subr.mxu0 0.0
    %215 = vmatpush1.msra.mxu0 %v181
    %216 = vmatprep.subr.mxu0 0.0
    %217 = vmatpush1.msra.mxu0 %v182
    %218 = vmatprep.subr.mxu0 0.0
    %219 = vmatpush1.msra.mxu0 %v183
    %220 = vmatprep.subr.mxu0 0.0
    %221 = vmatpush1.msra.mxu0 %v184
    %222 = vmatprep.subr.mxu0 0.0
    %223 = vmatpush1.msra.mxu0 %v185
    %224 = vmatprep.subr.mxu0 0.0
    %225 = vmatpush1.msra.mxu0 %v186
    %226 = vmatprep.subr.mxu0 0.0
    %227 = vmatpush1.msra.mxu0 0.0
    %228 = vmatprep.subr.mxu0 0.0
    %229 = vmatpush1.msra.mxu0 0.0
    %230 = vmatprep.subr.mxu0 0.0
    %231 = vmatpush1.msra.mxu0 0.0
    %232 = vmatprep.subr.mxu0 0.0
    %233 = vmatpush1.msra.mxu0 0.0
    %234 = vmatprep.subr.mxu0 0.0
    %235 = vmatpush1.msra.mxu0 0.0
    %236 = vmatprep.subr.mxu0 0.0
    %237 = vmatpush1.msra.mxu0 0.0
    %238 = vmatprep.subr.mxu0 0.0
    %239 = vmatpush1.msra.mxu0 0.0
    %240 = vmatprep.subr.mxu0 0.0
    %241 = vmatpush1.msra.mxu0 0.0
    %242 = vmatprep.subr.mxu0 0.0
    %243 = vmatpush1.msra.mxu0 0.0
    %244 = vmatprep.subr.mxu0 0.0
    %245 = vmatpush1.msra.mxu0 0.0
    %246 = vmatprep.subr.mxu0 0.0
    %247 = vmatpush1.msra.mxu0 0.0
    %248 = vmatprep.subr.mxu0 0.0
    %249 = vmatpush1.msra.mxu0 0.0
    %250 = vmatprep.subr.mxu0 0.0
    %251 = vmatpush1.msra.mxu0 0.0
    %252 = vmatprep.subr.mxu0 0.0
    %253 = vmatpush1.msra.mxu0 0.0
    %254 = vmatprep.subr.mxu0 0.0
    %255 = vmatpush1.msra.mxu0 0.0
    %256 = vmatprep.subr.mxu0 0.0
    %257 = vmatpush1.msra.mxu0 0.0
    %258 = vmatprep.mubr.f32.mxu0 0.0
    %259 = vmatmul.mubr.f32.gmra.mrb[0].mxu0 %v169
    %v260 = vpop.f32.mrb[0].mxu0
    %v261 = vadd.f32 %v192, %v260
    %v262 = vpop.f32.mrb[0].mxu0
    %263 = vmatprep.mubr.f32.mxu0 0.0
    %264 = vmatmul.mubr.f32.gmra.mrb[0].mxu0 %v170
    %v265 = vpop.f32.mrb[0].mxu0
    %v266 = vadd.f32 %v192, %v265
    %v267 = vpop.f32.mrb[0].mxu0
    %268 = vdwg.mxu0
    %v269 = vld [vmem:[%s1] sm:$0x3]
    %v270 = vxor.u32 %v269, 2147483648
    %v271 = vmul.f32 %v270, 1.442695
    %v272 = vpow.pop %v271
    %v273 = vadd.f32 %v272, 1.0
    %v274 = vrcp.pop %v273
    %v275 = vmul.f32 1.0, %v274
    %v276 = vmul.f32 %v269, %v275
    %v277 = vld [vmem:[%s6] sm:$0xff]
    %v278 = vld [vmem:[%s6 + $0x8] sm:$0xff]
    %v279 = vld [vmem:[%s6 + $0x10] sm:$0xff]
    %v280 = vld [vmem:[%s6 + $0x18] sm:$0xff]
    %v281 = vld [vmem:[%s7] sm:$0x1]
    %v283 = vlaneseq
    %v284 = vshrl.u32 %v283, 7
    %v285 = vsub.s32 0, %v284
    %v286 = vrot.slane %v281, %v285
    %vm288 = vcmask 261120
    %v290 = vsel %vm288, %v276, 0
    %292 = vmatprep.subr.mxu0 0.0
    %293 = vmatpush1.msra.mxu0 %v277
    %294 = vmatprep.subr.mxu0 0.0
    %295 = vmatpush1.msra.mxu0 %v278
    %296 = vmatprep.subr.mxu0 0.0
    %297 = vmatpush1.msra.mxu0 %v279
    %298 = vmatprep.subr.mxu0 0.0
    %299 = vmatpush1.msra.mxu0 %v280
    %300 = vmatprep.subr.mxu0 0.0
    %301 = vmatpush1.msra.mxu0 0.0
    %302 = vmatprep.subr.mxu0 0.0
    %303 = vmatpush1.msra.mxu0 0.0
    %304 = vmatprep.subr.mxu0 0.0
    %305 = vmatpush1.msra.mxu0 0.0
    %306 = vmatprep.subr.mxu0 0.0
    %307 = vmatpush1.msra.mxu0 0.0
    %308 = vmatprep.subr.mxu0 0.0
    %309 = vmatpush1.msra.mxu0 0.0
    %310 = vmatprep.subr.mxu0 0.0
    %311 = vmatpush1.msra.mxu0 0.0
    %312 = vmatprep.subr.mxu0 0.0
    %313 = vmatpush1.msra.mxu0 0.0
    %314 = vmatprep.subr.mxu0 0.0
    %315 = vmatpush1.msra.mxu0 0.0
    %316 = vmatprep.subr.mxu0 0.0
    %317 = vmatpush1.msra.mxu0 0.0
    %318 = vmatprep.subr.mxu0 0.0
    %319 = vmatpush1.msra.mxu0 0.0
    %320 = vmatprep.subr.mxu0 0.0
    %321 = vmatpush1.msra.mxu0 0.0
    %322 = vmatprep.subr.mxu0 0.0
    %323 = vmatpush1.msra.mxu0 0.0
    %324 = vmatprep.subr.mxu0 0.0
    %325 = vmatpush1.msra.mxu0 0.0
    %326 = vmatprep.subr.mxu0 0.0
    %327 = vmatpush1.msra.mxu0 0.0
    %328 = vmatprep.subr.mxu0 0.0
    %329 = vmatpush1.msra.mxu0 0.0
    %330 = vmatprep.subr.mxu0 0.0
    %331 = vmatpush1.msra.mxu0 0.0
    %332 = vmatprep.subr.mxu0 0.0
    %333 = vmatpush1.msra.mxu0 0.0
    %334 = vmatprep.subr.mxu0 0.0
    %335 = vmatpush1.msra.mxu0 0.0
    %336 = vmatprep.subr.mxu0 0.0
    %337 = vmatpush1.msra.mxu0 0.0
    %338 = vmatprep.subr.mxu0 0.0
    %339 = vmatpush1.msra.mxu0 0.0
    %340 = vmatprep.subr.mxu0 0.0
    %341 = vmatpush1.msra.mxu0 0.0
    %342 = vmatprep.subr.mxu0 0.0
    %343 = vmatpush1.msra.mxu0 0.0
    %344 = vmatprep.subr.mxu0 0.0
    %345 = vmatpush1.msra.mxu0 0.0
    %346 = vmatprep.subr.mxu0 0.0
    %347 = vmatpush1.msra.mxu0 0.0
    %348 = vmatprep.subr.mxu0 0.0
    %349 = vmatpush1.msra.mxu0 0.0
    %350 = vmatprep.subr.mxu0 0.0
    %351 = vmatpush1.msra.mxu0 0.0
    %352 = vmatprep.subr.mxu0 0.0
    %353 = vmatpush1.msra.mxu0 0.0
    %354 = vmatprep.subr.mxu0 0.0
    %355 = vmatpush1.msra.mxu0 0.0
    %356 = vmatprep.mubr.f32.mxu0 0.0
    %357 = vmatmul.mubr.f32.gmra.mrb[0].mxu0 %v290
    %v358 = vpop.f32.mrb[0].mxu0
    %v359 = vadd.f32 %v286, %v358
    %v360 = vpop.f32.mrb[0].mxu0
    %361 = vdwg.mxu0
    %v362 = vld [vmem:[%s8] sm:$0xff]
    %v363 = vld [vmem:[%s8 + $0x8] sm:$0xff]
    %v364 = vld [vmem:[%s8 + $0x10] sm:$0xff]
    %v365 = vld [vmem:[%s8 + $0x18] sm:$0xff]
    %v366 = vld [vmem:[%s9] sm:$0x1]
    %v368 = vlaneseq
    %v369 = vshrl.u32 %v368, 7
    %v370 = vsub.s32 0, %v369
    %v371 = vrot.slane %v366, %v370
    %373 = vmatprep.subr.mxu0 0.0
    %374 = vmatpush1.msra.mxu0 %v362
    %375 = vmatprep.subr.mxu0 0.0
    %376 = vmatpush1.msra.mxu0 %v363
    %377 = vmatprep.subr.mxu0 0.0
    %378 = vmatpush1.msra.mxu0 %v364
    %379 = vmatprep.subr.mxu0 0.0
    %380 = vmatpush1.msra.mxu0 %v365
    %381 = vmatprep.subr.mxu0 0.0
    %382 = vmatpush1.msra.mxu0 0.0
    %383 = vmatprep.subr.mxu0 0.0
    %384 = vmatpush1.msra.mxu0 0.0
    %385 = vmatprep.subr.mxu0 0.0
    %386 = vmatpush1.msra.mxu0 0.0
    %387 = vmatprep.subr.mxu0 0.0
    %388 = vmatpush1.msra.mxu0 0.0
    %389 = vmatprep.subr.mxu0 0.0
    %390 = vmatpush1.msra.mxu0 0.0
    %391 = vmatprep.subr.mxu0 0.0
    %392 = vmatpush1.msra.mxu0 0.0
    %393 = vmatprep.subr.mxu0 0.0
    %394 = vmatpush1.msra.mxu0 0.0
    %395 = vmatprep.subr.mxu0 0.0
    %396 = vmatpush1.msra.mxu0 0.0
    %397 = vmatprep.subr.mxu0 0.0
    %398 = vmatpush1.msra.mxu0 0.0
    %399 = vmatprep.subr.mxu0 0.0
    %400 = vmatpush1.msra.mxu0 0.0
    %401 = vmatprep.subr.mxu0 0.0
    %402 = vmatpush1.msra.mxu0 0.0
    %403 = vmatprep.subr.mxu0 0.0
    %404 = vmatpush1.msra.mxu0 0.0
    %405 = vmatprep.subr.mxu0 0.0
    %406 = vmatpush1.msra.mxu0 0.0
    %407 = vmatprep.subr.mxu0 0.0
    %408 = vmatpush1.msra.mxu0 0.0
    %409 = vmatprep.subr.mxu0 0.0
    %410 = vmatpush1.msra.mxu0 0.0
    %411 = vmatprep.subr.mxu0 0.0
    %412 = vmatpush1.msra.mxu0 0.0
    %413 = vmatprep.subr.mxu0 0.0
    %414 = vmatpush1.msra.mxu0 0.0
    %415 = vmatprep.subr.mxu0 0.0
    %416 = vmatpush1.msra.mxu0 0.0
    %417 = vmatprep.subr.mxu0 0.0
    %418 = vmatpush1.msra.mxu0 0.0
    %419 = vmatprep.subr.mxu0 0.0
    %420 = vmatpush1.msra.mxu0 0.0
    %421 = vmatprep.subr.mxu0 0.0
    %422 = vmatpush1.msra.mxu0 0.0
    %423 = vmatprep.subr.mxu0 0.0
    %424 = vmatpush1.msra.mxu0 0.0
    %425 = vmatprep.subr.mxu0 0.0
    %426 = vmatpush1.msra.mxu0 0.0
    %427 = vmatprep.subr.mxu0 0.0
    %428 = vmatpush1.msra.mxu0 0.0
    %429 = vmatprep.subr.mxu0 0.0
    %430 = vmatpush1.msra.mxu0 0.0
    %431 = vmatprep.subr.mxu0 0.0
    %432 = vmatpush1.msra.mxu0 0.0
    %433 = vmatprep.subr.mxu0 0.0
    %434 = vmatpush1.msra.mxu0 0.0
    %435 = vmatprep.subr.mxu0 0.0
    %436 = vmatpush1.msra.mxu0 0.0
    %437 = vmatprep.mubr.f32.mxu0 0.0
    %438 = vmatmul.mubr.f32.gmra.mrb[0].mxu0 %v290
    %v439 = vpop.f32.mrb[0].mxu0
    %v440 = vadd.f32 %v371, %v439
    %v441 = vpop.f32.mrb[0].mxu0
    %442 = vdwg.mxu0
    %v443 = vsel %vm79, %v261, 0.0
    %444 = vadd.xlane.f32.xlu0 %v443
    %v445 = vpop.xlane.xlu0 %444
    %v446 = vsel %vm79, %v266, 0.0
    %447 = vadd.xlane.f32.xlu0 %v446
    %v448 = vpop.xlane.xlu0 %447
    %v449 = vrcp.pop 64.0
    %v450 = vmul.f32 %v445, %v449
    %v451 = vmul.f32 %v448, %v449
    %v452 = vsub.f32 %v261, %v450
    %v453 = vsub.f32 %v266, %v451
    %v454 = vmul.f32 %v452, %v452
    %v455 = vmul.f32 %v453, %v453
    %v456 = vsel %vm79, %v454, 0.0
    %457 = vadd.xlane.f32.xlu0 %v456
    %v458 = vpop.xlane.xlu0 %457
    %v459 = vsel %vm79, %v455, 0.0
    %460 = vadd.xlane.f32.xlu0 %v459
    %v461 = vpop.xlane.xlu0 %460
    %v462 = vmul.f32 %v458, %v449
    %v463 = vmul.f32 %v461, %v449
    %v464 = vadd.f32 %v462, 1e-05
    %v465 = vadd.f32 %v463, 1e-05
    %v466 = vrsqrt.pop %v464
    %v467 = vrsqrt.pop %v465
    %v468 = vmul.f32 %v452, %v466
    %v469 = vmul.f32 %v453, %v467
    %v470 = vld [vmem:[%s10] sm:$0x1]
    %v472 = vlaneseq
    %v473 = vshrl.u32 %v472, 7
    %v474 = vsub.s32 0, %v473
    %v475 = vrot.slane %v470, %v474
    %v477 = vmul.f32 %v468, %v475
    %v478 = vmul.f32 %v469, %v475
    %v479 = vld [vmem:[%s11] sm:$0x1]
    %v481 = vlaneseq
    %v482 = vshrl.u32 %v481, 7
    %v483 = vsub.s32 0, %v482
    %v484 = vrot.slane %v479, %v483
    %v486 = vadd.f32 %v477, %v484
    %v487 = vadd.f32 %v478, %v484
    %v490 = vunpack.c.l.s4 1966171168
    %v491 = vunpack.c.0.s8 %v490
    %v492 = vlaneseq
    %v493 = vshrl.u32 %v492, 7
    %v494 = vsub.s32 %v491, %v493
    %v495 = vrot.slane %v359, %v494
    %v496 = vcombine.high %v495, %v495
    %v498 = vunpack.c.l.s4 1966171168
    %v499 = vunpack.c.0.s8 %v498
    %v500 = vlaneseq
    %v501 = vshrl.u32 %v500, 7
    %v502 = vsub.s32 %v499, %v501
    %v503 = vrot.slane %v495, %v502
    %v505 = vunpack.c.l.s4 1966171168
    %v506 = vunpack.c.0.s8 %v505
    %v507 = vlaneseq
    %v508 = vshrl.u32 %v507, 7
    %v509 = vsub.s32 %v506, %v508
    %v510 = vrot.slane %v496, %v509
    %v513 = vadd.f32 %v503, 1.0
    %v514 = vadd.f32 %v510, 1.0
    %v517 = vlaneseq
    %v518 = vshrl.u32 %v517, 7
    %v519 = vsub.s32 0, %v518
    %v520 = vrot.slane %v513, %v519
    %v521 = vlaneseq
    %v522 = vshrl.u32 %v521, 7
    %v523 = vsub.s32 0, %v522
    %v524 = vrot.slane %v514, %v523
    %v527 = vmul.f32 %v486, %v520
    %v528 = vmul.f32 %v487, %v524
    %v531 = vunpack.c.l.s4 1966171168
    %v532 = vunpack.c.0.s8 %v531
    %v533 = vlaneseq
    %v534 = vshrl.u32 %v533, 7
    %v535 = vsub.s32 %v532, %v534
    %v536 = vrot.slane %v440, %v535
    %v537 = vcombine.high %v536, %v536
    %v539 = vunpack.c.l.s4 1966171168
    %v540 = vunpack.c.0.s8 %v539
    %v541 = vlaneseq
    %v542 = vshrl.u32 %v541, 7
    %v543 = vsub.s32 %v540, %v542
    %v544 = vrot.slane %v536, %v543
    %v546 = vunpack.c.l.s4 1966171168
    %v547 = vunpack.c.0.s8 %v546
    %v548 = vlaneseq
    %v549 = vshrl.u32 %v548, 7
    %v550 = vsub.s32 %v547, %v549
    %v551 = vrot.slane %v537, %v550
    %v552 = vlaneseq
    %v553 = vshrl.u32 %v552, 7
    %v554 = vsub.s32 0, %v553
    %v555 = vrot.slane %v544, %v554
    %v556 = vlaneseq
    %v557 = vshrl.u32 %v556, 7
    %v558 = vsub.s32 0, %v557
    %v559 = vrot.slane %v551, %v558
    %v562 = vadd.f32 %v527, %v555
    %v563 = vadd.f32 %v528, %v559
    %v564 = vxor.u32 %v562, 2147483648
    %v565 = vxor.u32 %v563, 2147483648
    %v566 = vmul.f32 %v564, 1.442695
    %v567 = vpow.pop %v566
    %v568 = vmul.f32 %v565, 1.442695
    %v569 = vpow.pop %v568
    %v570 = vadd.f32 %v567, 1.0
    %v571 = vadd.f32 %v569, 1.0
    %v572 = vrcp.pop %v570
    %v573 = vmul.f32 1.0, %v572
    %v574 = vrcp.pop %v571
    %v575 = vmul.f32 1.0, %v574
    %v576 = vmul.f32 %v562, %v573
    %v577 = vmul.f32 %v563, %v575
    %v578 = vld [vmem:[%s12] sm:$0xff]
    %v579 = vld [vmem:[%s12 + $0x8] sm:$0xff]
    %v580 = vld [vmem:[%s12 + $0x10] sm:$0xff]
    %v581 = vld [vmem:[%s12 + $0x18] sm:$0xff]
    %v582 = vld [vmem:[%s12 + $0x20] sm:$0xff]
    %v583 = vld [vmem:[%s12 + $0x28] sm:$0xff]
    %v584 = vld [vmem:[%s12 + $0x30] sm:$0xff]
    %v585 = vld [vmem:[%s12 + $0x38] sm:$0xff]
    %v586 = vld [vmem:[%s13] sm:$0x1]
    %v588 = vlaneseq
    %v589 = vshrl.u32 %v588, 7
    %v590 = vsub.s32 0, %v589
    %v591 = vrot.slane %v586, %v590
    %v594 = vsel %vm79, %v576, 0
    %v597 = vsel %vm79, %v577, 0
    %599 = vmatprep.subr.mxu0 0.0
    %600 = vmatpush1.msra.mxu0 %v578
    %601 = vmatprep.subr.mxu0 0.0
    %602 = vmatpush1.msra.mxu0 %v579
    %603 = vmatprep.subr.mxu0 0.0
    %604 = vmatpush1.msra.mxu0 %v580
    %605 = vmatprep.subr.mxu0 0.0
    %606 = vmatpush1.msra.mxu0 %v581
    %607 = vmatprep.subr.mxu0 0.0
    %608 = vmatpush1.msra.mxu0 %v582
    %609 = vmatprep.subr.mxu0 0.0
    %610 = vmatpush1.msra.mxu0 %v583
    %611 = vmatprep.subr.mxu0 0.0
    %612 = vmatpush1.msra.mxu0 %v584
    %613 = vmatprep.subr.mxu0 0.0
    %614 = vmatpush1.msra.mxu0 %v585
    %615 = vmatprep.subr.mxu0 0.0
    %616 = vmatpush1.msra.mxu0 0.0
    %617 = vmatprep.subr.mxu0 0.0
    %618 = vmatpush1.msra.mxu0 0.0
    %619 = vmatprep.subr.mxu0 0.0
    %620 = vmatpush1.msra.mxu0 0.0
    %621 = vmatprep.subr.mxu0 0.0
    %622 = vmatpush1.msra.mxu0 0.0
    %623 = vmatprep.subr.mxu0 0.0
    %624 = vmatpush1.msra.mxu0 0.0
    %625 = vmatprep.subr.mxu0 0.0
    %626 = vmatpush1.msra.mxu0 0.0
    %627 = vmatprep.subr.mxu0 0.0
    %628 = vmatpush1.msra.mxu0 0.0
    %629 = vmatprep.subr.mxu0 0.0
    %630 = vmatpush1.msra.mxu0 0.0
    %631 = vmatprep.subr.mxu0 0.0
    %632 = vmatpush1.msra.mxu0 0.0
    %633 = vmatprep.subr.mxu0 0.0
    %634 = vmatpush1.msra.mxu0 0.0
    %635 = vmatprep.subr.mxu0 0.0
    %636 = vmatpush1.msra.mxu0 0.0
    %637 = vmatprep.subr.mxu0 0.0
    %638 = vmatpush1.msra.mxu0 0.0
    %639 = vmatprep.subr.mxu0 0.0
    %640 = vmatpush1.msra.mxu0 0.0
    %641 = vmatprep.subr.mxu0 0.0
    %642 = vmatpush1.msra.mxu0 0.0
    %643 = vmatprep.subr.mxu0 0.0
    %644 = vmatpush1.msra.mxu0 0.0
    %645 = vmatprep.subr.mxu0 0.0
    %646 = vmatpush1.msra.mxu0 0.0
    %647 = vmatprep.subr.mxu0 0.0
    %648 = vmatpush1.msra.mxu0 0.0
    %649 = vmatprep.subr.mxu0 0.0
    %650 = vmatpush1.msra.mxu0 0.0
    %651 = vmatprep.subr.mxu0 0.0
    %652 = vmatpush1.msra.mxu0 0.0
    %653 = vmatprep.subr.mxu0 0.0
    %654 = vmatpush1.msra.mxu0 0.0
    %655 = vmatprep.subr.mxu0 0.0
    %656 = vmatpush1.msra.mxu0 0.0
    %657 = vmatprep.subr.mxu0 0.0
    %658 = vmatpush1.msra.mxu0 0.0
    %659 = vmatprep.subr.mxu0 0.0
    %660 = vmatpush1.msra.mxu0 0.0
    %661 = vmatprep.subr.mxu0 0.0
    %662 = vmatpush1.msra.mxu0 0.0
    %663 = vmatprep.mubr.f32.mxu0 0.0
    %664 = vmatmul.mubr.f32.gmra.mrb[0].mxu0 %v594
    %v665 = vpop.f32.mrb[0].mxu0
    %v666 = vadd.f32 %v591, %v665
    %v667 = vpop.f32.mrb[0].mxu0
    %668 = vmatprep.mubr.f32.mxu0 0.0
    %669 = vmatmul.mubr.f32.gmra.mrb[0].mxu0 %v597
    %v670 = vpop.f32.mrb[0].mxu0
    %v671 = vadd.f32 %v591, %v670
    %v672 = vpop.f32.mrb[0].mxu0
    %673 = vdwg.mxu0
    %v674 = vadd.f32 %v62, %v666
    %v675 = vadd.f32 %v63, %v671
    %676 = vst.msk [vmem:[#allocation5] sm:$0xff] %vm79, %v674
    %677 = vst.msk [vmem:[#allocation5 + $0x8] sm:$0xff] %vm79, %v675
    // Predicated region
    $region62: #{decoder_layer.1} parent=1 // pred_check
      _
    $region63: #{decoder_layer.1} parent=1 // pred_check_branch
      %679 = sbr.rel (0) target = $region65
    $region64: #{decoder_layer.1} parent=1 // pred_region
      %s681 = ssub.s32 256, 256
      %682 = vsyncadd [#allocation4], %s681
      %s683 = sshll.u32 [#allocation5], 4
      %s684 = int_to_ptr.vmem [resolvable:$true] %s683
      %689 = dma.vmem_to_hbm [thread:$0]  %s684, 256, %s14, [#allocation4], 128, 128, 8
    $region65: #{decoder_layer.1} parent=1 // pred_fallthru
      _
    // Predicated region
    $region66: #{decoder_layer.1} parent=1 // pred_check
      _
    $region67: #{decoder_layer.1} parent=1 // pred_check_branch
      %691 = sbr.rel (0) target = $region69
    $region68: #{decoder_layer.1} parent=1 // pred_region
      %692 = dma.done [#allocation4], 256
    $region69: #{decoder_layer.1} parent=1 // pred_fallthru
      _
    %693 = vsyncpa [#allocation3], 1
    %694 = vsyncpa [#allocation4], 1

</llo_original>
